<compile_context>
chip_gen: v7x
topology: tpu7x:2x2x1
jax: 0.10.0
libtpu: 0.0.40
codegen_flags: <defaults>
</compile_context>

<pallas_src>
import functools

import jax
import jax.numpy as jnp
from jax import lax
from jax.experimental import pallas as pl
from jax.experimental.pallas import tpu as pltpu

EXPERT_DIM = 128

_TARGET_OUT_BLOCK_BYTES = 8 * 1024 * 1024  # per output buffer (double-buffered)
_MAX_TB = 16                               # keeps per-step broadcast in-register


def _choose_tiles(B, T, E, itemsize):
    """Output block (tb, tt, E): prefer contiguous full-T slabs near 8 MiB."""
    row_bytes = E * itemsize
    # tb is also the sublane dim of the x block: multiple of 8 or the full B.
    tb = B if B <= _MAX_TB else _MAX_TB
    full_t_ok = (T % 8 == 0) or (T <= 32)
    if full_t_ok and tb * T * row_bytes <= _TARGET_OUT_BLOCK_BYTES:
        tt = T  # one fully contiguous HBM slab per block, no T grid splitting
    else:
        tt = (_TARGET_OUT_BLOCK_BYTES // (tb * row_bytes)) // 8 * 8
        tt = int(max(8, min(tt, max(8, (T // 8) * 8))))
    return tb, tt


def _choose_chunk(tb, tt):
    """Broadcast-store chunk along T: tb*chunk*E f32 stays <= ~32 vregs."""
    if tt % 8 != 0:            # only happens for small full-T blocks (T <= 32)
        return tt
    target = max(8, (256 // max(tb, 1)) // 8 * 8)
    c = min(target, tt)
    while c > 8 and tt % c != 0:
        c -= 8
    return c


def _text_expert_kernel(x_ref, w_ref, b_ref, o_ref, *, chunk):
    tb, tt, e = o_ref.shape
    # Tiny projection, recomputed each grid step: keeps both grid axes
    # carry-free ("parallel") and the MXU is otherwise idle here anyway.
    h = jnp.dot(x_ref[...], w_ref[...], preferred_element_type=jnp.float32)
    h = (h + b_ref[...]).astype(o_ref.dtype)               # [tb, E]

    # Hoist the time-broadcast once (JAX does not CSE broadcast_in_dim), then
    # stream it to the output tile as a pure vst loop of aligned chunks.
    h_blk = jnp.broadcast_to(h[:, None, :], (tb, chunk, e))
    n_chunks = tt // chunk
    if n_chunks == 1:
        o_ref[...] = h_blk
    else:
        def body(c, carry):
            t0 = pl.multiple_of(c * chunk, chunk)
            o_ref[:, pl.ds(t0, chunk), :] = h_blk
            return carry
        lax.fori_loop(0, n_chunks, body, 0, unroll=n_chunks <= 8)


def text_expert_forward(text_emb, weight, bias, T):
    """text_emb: [B, D_text], weight: [D_text, E], bias: [E] -> [B, T, E]."""
    B, D = text_emb.shape
    E = weight.shape[1]
    out_dtype = text_emb.dtype
    itemsize = jnp.dtype(out_dtype).itemsize
    bias2d = bias.reshape(1, E).astype(out_dtype)

    tb, tt = _choose_tiles(B, T, E, itemsize)
    chunk = _choose_chunk(tb, tt)
    grid = (pl.cdiv(B, tb), pl.cdiv(T, tt))

    out_block_bytes = tb * tt * E * itemsize
    in_block_bytes = (tb * D + D * E + E) * itemsize
    # Double-buffered blocks + headroom; >= 32 MiB (v5e scoped default is only
    # 16 MiB), <= 48 MiB (never approach v7x's 64 MiB physical VMEM).
    vmem_limit = int(min(max(2 * (out_block_bytes + in_block_bytes) + (2 << 20),
                             32 << 20),
                         48 << 20))

    kernel = functools.partial(_text_expert_kernel, chunk=chunk)
    return pl.pallas_call(
        kernel,
        out_shape=jax.ShapeDtypeStruct((B, T, E), out_dtype),
        grid_spec=pltpu.PrefetchScalarGridSpec(
            num_scalar_prefetch=0,
            grid=grid,
            in_specs=[
                pl.BlockSpec((tb, D), lambda i, j: (i, 0)),
                pl.BlockSpec((D, E), lambda i, j: (0, 0)),
                pl.BlockSpec((1, E), lambda i, j: (0, 0)),
            ],
            out_specs=pl.BlockSpec((tb, tt, E), lambda i, j: (i, j, 0)),
        ),
        compiler_params=pltpu.CompilerParams(
            # No state is carried across grid steps -> both axes independent
            # (v7x megacore can shard either).
            dimension_semantics=("parallel", "parallel"),
            vmem_limit_bytes=vmem_limit),
    )(text_emb, weight, bias2d)


if __name__ == "__main__":
    key = jax.random.PRNGKey(0)
    B, D_text, T = 2, 32, 8

    k_x, k_w, k_b = jax.random.split(key, 3)
    # Deterministic synthetic params (nn.Linear-style uniform init, in-script).
    bound = 1.0 / (D_text ** 0.5)
    weight = jax.random.uniform(k_w, (D_text, EXPERT_DIM), jnp.float32,
                                minval=-bound, maxval=bound)
    bias = jax.random.uniform(k_b, (EXPERT_DIM,), jnp.float32,
                              minval=-bound, maxval=bound)
    text_emb = jax.random.normal(k_x, (B, D_text), jnp.float32)

    out = text_expert_forward(text_emb, weight, bias, T)
    out = jax.block_until_ready(out)

    # Reference check against plain JAX.
    ref = jnp.broadcast_to((text_emb @ weight + bias)[:, None, :],
                           (B, T, EXPERT_DIM))
    assert out.shape == (B, T, EXPERT_DIM)
    assert jnp.allclose(out, ref, atol=1e-5, rtol=1e-5)

    print("KERNEL_OK")
</pallas_src>

<mosaic_0001>
module attributes {stable_mosaic.version = 11 : i64} {
  func.func @_text_expert_kernel(%arg0: i32, %arg1: i32, %arg2: memref<2x32xf32, #tpu.memory_space<vmem>>, %arg3: memref<32x128xf32, #tpu.memory_space<vmem>>, %arg4: memref<1x128xf32, #tpu.memory_space<vmem>>, %arg5: memref<2x8x128xf32, #tpu.memory_space<vmem>>) attributes {dimension_semantics = [#tpu.dimension_semantics<parallel>, #tpu.dimension_semantics<parallel>], iteration_bounds = array<i64: 1, 1>, scalar_prefetch = 0 : i64, scratch_operands = 0 : i64, tpu.core_type = #tpu.core_type<tc>, window_params = [{transform_indices = @transform_0, window_bounds = array<i64: 2, 32>}, {pipeline_mode = #tpu.pipeline_mode<synchronous>, transform_indices = @transform_1, window_bounds = array<i64: 32, 128>}, {pipeline_mode = #tpu.pipeline_mode<synchronous>, transform_indices = @transform_2, window_bounds = array<i64: 1, 128>}, {transform_indices = @transform_3, window_bounds = array<i64: 2, 8, 128>}]} {
    %c0 = arith.constant 0 : index
    %c0_0 = arith.constant 0 : index
    %0 = vector.load %arg2[%c0, %c0_0] : memref<2x32xf32, #tpu.memory_space<vmem>>, vector<2x32xf32>
    %c0_1 = arith.constant 0 : index
    %c0_2 = arith.constant 0 : index
    %1 = vector.load %arg3[%c0_1, %c0_2] : memref<32x128xf32, #tpu.memory_space<vmem>>, vector<32x128xf32>
    %cst = arith.constant dense<0.000000e+00> : vector<2x128xf32>
    %2 = tpu.matmul %0, %1, %cst {dimension_numbers = #tpu.dot_dimension_numbers<[1], [0], [0], [1], [0, 0, 1, 1], [], []>} : vector<2x32xf32>, vector<32x128xf32>, vector<2x128xf32> -> vector<2x128xf32>
    %c0_3 = arith.constant 0 : index
    %c0_4 = arith.constant 0 : index
    %3 = vector.load %arg4[%c0_3, %c0_4] : memref<1x128xf32, #tpu.memory_space<vmem>>, vector<1x128xf32>
    %4 = vector.broadcast %3 : vector<1x128xf32> to vector<2x128xf32>
    %5 = arith.addf %2, %4 : vector<2x128xf32>
    %6 = vector.shape_cast %5 : vector<2x128xf32> to vector<2x1x128xf32>
    %7 = vector.shape_cast %6 : vector<2x1x128xf32> to vector<2x1x128xf32>
    %8 = vector.broadcast %7 : vector<2x1x128xf32> to vector<2x8x128xf32>
    %c0_5 = arith.constant 0 : index
    %c0_6 = arith.constant 0 : index
    %c0_7 = arith.constant 0 : index
    %9 = vector.load %arg5[%c0_5, %c0_6, %c0_7] : memref<2x8x128xf32, #tpu.memory_space<vmem>>, vector<2x8x128xf32>
    tpu.vector_store %arg5[%c0_5, %c0_6, %c0_7], %8 {strides = array<i32>} : memref<2x8x128xf32, #tpu.memory_space<vmem>>, vector<2x8x128xf32>,
    return
  }
  func.func @transform_0(%arg0: i32, %arg1: i32) -> (i32, i32) {
    %c0_i32 = arith.constant 0 : i32
    %c0_i32_0 = arith.constant 0 : i32
    return %arg0, %c0_i32 : i32, i32
  }
  func.func @transform_1(%arg0: i32, %arg1: i32) -> (i32, i32) {
    %c0_i32 = arith.constant 0 : i32
    %c0_i32_0 = arith.constant 0 : i32
    %c0_i32_1 = arith.constant 0 : i32
    return %c0_i32, %c0_i32_0 : i32, i32
  }
  func.func @transform_2(%arg0: i32, %arg1: i32) -> (i32, i32) {
    %c0_i32 = arith.constant 0 : i32
    %c0_i32_0 = arith.constant 0 : i32
    %c0_i32_1 = arith.constant 0 : i32
    return %c0_i32, %c0_i32_0 : i32, i32
  }
  func.func @transform_3(%arg0: i32, %arg1: i32) -> (i32, i32, i32) {
    %c0_i32 = arith.constant 0 : i32
    %c0_i32_0 = arith.constant 0 : i32
    return %arg0, %arg1, %c0_i32 : i32, i32, i32
  }
}

</mosaic_0001>

<llo_original>
// kernel: tpu_custom_call.1
$region0: #{tpu_custom_call.1}
  #allocation0 [shape = 'u32[]', space=smem, size = 0x4, offset = 0x4, fixed_abs, tag = 'smem constant byte address 0x4 - core index']
  #allocation1 [shape = 'u32[144,128]{1,0:T(1,128)}', space=vmem, size = 0x12000, scoped, tag = 'internal scratch']
  %s0 = inlined_call_operand.hbm [shape: f32[2,32], index: 0, kind: input, shape index: {}]
  %s1 = inlined_call_operand.hbm [shape: f32[32,128], index: 1, kind: input, shape index: {}]
  %s2 = inlined_call_operand.vmem [shape: f32[1,128], index: 2, kind: input, shape index: {}]
  %s3 = inlined_call_operand.hbm [shape: f32[2,8,128], index: 3, kind: output, shape index: {}]
  %s4 = sld [smem:[#allocation0]]
  $region30: #{tpu_custom_call.1} parent=0
    _
  %s6 = ssub.s32 1, %s4
  %s7 = scalar_select 0, %s6, %s4
  $region1: #{tpu_custom_call.1} parent=0
    #allocation2 [shape = 'u8[1024]{0}', space=vmem, size = 0x400, scoped, tag = 'input window, operand 0, single buffered']
    #allocation3 [shape = 's32[1]{0}', space=sflag, size = 0x4, scoped, tag = 'scoped memory for tpu_custom_call.1']
    #allocation4 [shape = 's32[1]{0}', space=sflag, size = 0x4, scoped, tag = 'scoped memory for tpu_custom_call.1']
    #allocation5 [shape = 'u8[16384]{0}', space=vmem, size = 0x4000, scoped, tag = 'input window, operand 1, single buffered']
    #allocation6 [shape = 's32[1]{0}', space=sflag, size = 0x4, scoped, tag = 'scoped memory for tpu_custom_call.1']
    #allocation7 [shape = 'u8[8192]{0}', space=vmem, size = 0x2000, scoped, tag = 'output window, operand 0, single buffered']
    %8 = vsyncpa [#allocation3], 0
    %9 = vsyncpa [#allocation6], 0
    %10 = vsyncpa [#allocation4], 0
    // Predicated region
    $region2: #{tpu_custom_call.1} parent=1 // pred_check
      _
    $region3: #{tpu_custom_call.1} parent=1 // pred_check_branch
      %12 = sbr.rel (0) target = $region5
    $region4: #{tpu_custom_call.1} parent=1 // pred_region
      %s14 = ssub.s32 32, 32
      %15 = vsyncadd [#allocation3], %s14
      %s17 = sshll.u32 [#allocation2], 4
      %s18 = int_to_ptr.vmem [resolvable:$true] %s17
      %20 = dma.hbm_to_vmem [thread:$0]  %s0, 32, %s18, [#allocation3]
    $region5: #{tpu_custom_call.1} parent=1 // pred_fallthru
      _
    // Predicated region
    $region6: #{tpu_custom_call.1} parent=1 // pred_check
      _
    $region7: #{tpu_custom_call.1} parent=1 // pred_check_branch
      %22 = sbr.rel (0) target = $region9
    $region8: #{tpu_custom_call.1} parent=1 // pred_region
      %s24 = ssub.s32 512, 512
      %25 = vsyncadd [#allocation6], %s24
      %s26 = sshll.u32 [#allocation5], 4
      %s27 = int_to_ptr.vmem [resolvable:$true] %s26
      %32 = dma.hbm_to_vmem [thread:$0]  %s1, 512, %s27, [#allocation6], 128, 128, 8
    $region9: #{tpu_custom_call.1} parent=1 // pred_fallthru
      _
    // Predicated region
    $region10: #{tpu_custom_call.1} parent=1 // pred_check
      _
    $region11: #{tpu_custom_call.1} parent=1 // pred_check_branch
      %34 = sbr.rel (0) target = $region13
    $region12: #{tpu_custom_call.1} parent=1 // pred_region
      _
    $region13: #{tpu_custom_call.1} parent=1 // pred_fallthru
      _
    // Predicated region
    $region14: #{tpu_custom_call.1} parent=1 // pred_check
      _
    $region15: #{tpu_custom_call.1} parent=1 // pred_check_branch
      %36 = sbr.rel (0) target = $region17
    $region16: #{tpu_custom_call.1} parent=1 // pred_region
      %37 = dma.done [#allocation3], 32
    $region17: #{tpu_custom_call.1} parent=1 // pred_fallthru
      _
    // Predicated region
    $region18: #{tpu_custom_call.1} parent=1 // pred_check
      _
    $region19: #{tpu_custom_call.1} parent=1 // pred_check_branch
      %39 = sbr.rel (0) target = $region21
    $region20: #{tpu_custom_call.1} parent=1 // pred_region
      %40 = dma.done [#allocation6], 512
    $region21: #{tpu_custom_call.1} parent=1 // pred_fallthru
      _
    %v41 = vld [vmem:[#allocation2] sm:$0x3]
    %v42 = vld [vmem:[#allocation5] sm:$0xff]
    %v43 = vld [vmem:[#allocation5 + $0x8] sm:$0xff]
    %v44 = vld [vmem:[#allocation5 + $0x10] sm:$0xff]
    %v45 = vld [vmem:[#allocation5 + $0x18] sm:$0xff]
    %v46 = vld [vmem:[%s2] sm:$0x1]
    %v48 = vlaneseq
    %v49 = vshrl.u32 %v48, 7
    %v50 = vsub.s32 0, %v49
    %v51 = vrot.slane %v46, %v50
    %vm53 = vcmask 261120
    %v55 = vsel %vm53, %v41, 0
    %57 = vmatprep.subr.mxu0 0.0
    %58 = vmatpush1.msra.mxu0 %v42
    %59 = vmatprep.subr.mxu0 0.0
    %60 = vmatpush1.msra.mxu0 %v43
    %61 = vmatprep.subr.mxu0 0.0
    %62 = vmatpush1.msra.mxu0 %v44
    %63 = vmatprep.subr.mxu0 0.0
    %64 = vmatpush1.msra.mxu0 %v45
    %65 = vmatprep.subr.mxu0 0.0
    %66 = vmatpush1.msra.mxu0 0.0
    %67 = vmatprep.subr.mxu0 0.0
    %68 = vmatpush1.msra.mxu0 0.0
    %69 = vmatprep.subr.mxu0 0.0
    %70 = vmatpush1.msra.mxu0 0.0
    %71 = vmatprep.subr.mxu0 0.0
    %72 = vmatpush1.msra.mxu0 0.0
    %73 = vmatprep.subr.mxu0 0.0
    %74 = vmatpush1.msra.mxu0 0.0
    %75 = vmatprep.subr.mxu0 0.0
    %76 = vmatpush1.msra.mxu0 0.0
    %77 = vmatprep.subr.mxu0 0.0
    %78 = vmatpush1.msra.mxu0 0.0
    %79 = vmatprep.subr.mxu0 0.0
    %80 = vmatpush1.msra.mxu0 0.0
    %81 = vmatprep.subr.mxu0 0.0
    %82 = vmatpush1.msra.mxu0 0.0
    %83 = vmatprep.subr.mxu0 0.0
    %84 = vmatpush1.msra.mxu0 0.0
    %85 = vmatprep.subr.mxu0 0.0
    %86 = vmatpush1.msra.mxu0 0.0
    %87 = vmatprep.subr.mxu0 0.0
    %88 = vmatpush1.msra.mxu0 0.0
    %89 = vmatprep.subr.mxu0 0.0
    %90 = vmatpush1.msra.mxu0 0.0
    %91 = vmatprep.subr.mxu0 0.0
    %92 = vmatpush1.msra.mxu0 0.0
    %93 = vmatprep.subr.mxu0 0.0
    %94 = vmatpush1.msra.mxu0 0.0
    %95 = vmatprep.subr.mxu0 0.0
    %96 = vmatpush1.msra.mxu0 0.0
    %97 = vmatprep.subr.mxu0 0.0
    %98 = vmatpush1.msra.mxu0 0.0
    %99 = vmatprep.subr.mxu0 0.0
    %100 = vmatpush1.msra.mxu0 0.0
    %101 = vmatprep.subr.mxu0 0.0
    %102 = vmatpush1.msra.mxu0 0.0
    %103 = vmatprep.subr.mxu0 0.0
    %104 = vmatpush1.msra.mxu0 0.0
    %105 = vmatprep.subr.mxu0 0.0
    %106 = vmatpush1.msra.mxu0 0.0
    %107 = vmatprep.subr.mxu0 0.0
    %108 = vmatpush1.msra.mxu0 0.0
    %109 = vmatprep.subr.mxu0 0.0
    %110 = vmatpush1.msra.mxu0 0.0
    %111 = vmatprep.subr.mxu0 0.0
    %112 = vmatpush1.msra.mxu0 0.0
    %113 = vmatprep.subr.mxu0 0.0
    %114 = vmatpush1.msra.mxu0 0.0
    %115 = vmatprep.subr.mxu0 0.0
    %116 = vmatpush1.msra.mxu0 0.0
    %117 = vmatprep.subr.mxu0 0.0
    %118 = vmatpush1.msra.mxu0 0.0
    %119 = vmatprep.subr.mxu0 0.0
    %120 = vmatpush1.msra.mxu0 0.0
    %121 = vmatprep.mubr.f32.mxu0 0.0
    %122 = vmatmul.mubr.f32.gmra.mrb[0].mxu0 %v55
    %v123 = vpop.f32.mrb[0].mxu0
    %v124 = vadd.f32 %v51, %v123
    %v125 = vpop.f32.mrb[0].mxu0
    %126 = vdwg.mxu0
    %v129 = vunpack.c.l.s4 1966171168
    %v130 = vunpack.c.0.s8 %v129
    %v131 = vlaneseq
    %v132 = vshrl.u32 %v131, 7
    %v133 = vsub.s32 %v130, %v132
    %v134 = vrot.slane %v124, %v133
    %v135 = vcombine.high %v134, %v134
    %v137 = vunpack.c.l.s4 1966171168
    %v138 = vunpack.c.0.s8 %v137
    %v139 = vlaneseq
    %v140 = vshrl.u32 %v139, 7
    %v141 = vsub.s32 %v138, %v140
    %v142 = vrot.slane %v134, %v141
    %v144 = vunpack.c.l.s4 1966171168
    %v145 = vunpack.c.0.s8 %v144
    %v146 = vlaneseq
    %v147 = vshrl.u32 %v146, 7
    %v148 = vsub.s32 %v145, %v147
    %v149 = vrot.slane %v135, %v148
    %v150 = vlaneseq
    %v151 = vshrl.u32 %v150, 7
    %v152 = vsub.s32 0, %v151
    %v153 = vrot.slane %v142, %v152
    %v154 = vlaneseq
    %v155 = vshrl.u32 %v154, 7
    %v156 = vsub.s32 0, %v155
    %v157 = vrot.slane %v149, %v156
    %160 = vst [vmem:[#allocation7] sm:$0xff] %v153
    %161 = vst [vmem:[#allocation7 + $0x8] sm:$0xff] %v157
    // Predicated region
    $region22: #{tpu_custom_call.1} parent=1 // pred_check
      _
    $region23: #{tpu_custom_call.1} parent=1 // pred_check_branch
      %163 = sbr.rel (0) target = $region25
    $region24: #{tpu_custom_call.1} parent=1 // pred_region
      %s165 = ssub.s32 256, 256
      %166 = vsyncadd [#allocation4], %s165
      %s167 = sshll.u32 [#allocation7], 4
      %s168 = int_to_ptr.vmem [resolvable:$true] %s167
      %173 = dma.vmem_to_hbm [thread:$0]  %s168, 256, %s3, [#allocation4], 128, 128, 8
    $region25: #{tpu_custom_call.1} parent=1 // pred_fallthru
      _
    // Predicated region
    $region26: #{tpu_custom_call.1} parent=1 // pred_check
      _
    $region27: #{tpu_custom_call.1} parent=1 // pred_check_branch
      %175 = sbr.rel (0) target = $region29
    $region28: #{tpu_custom_call.1} parent=1 // pred_region
      %176 = dma.done [#allocation4], 256
    $region29: #{tpu_custom_call.1} parent=1 // pred_fallthru
      _
    %177 = vsyncpa [#allocation3], 1
    %178 = vsyncpa [#allocation6], 1
    %179 = vsyncpa [#allocation4], 1

</llo_original>
